<compile_context>
chip_gen: v7x
topology: tpu7x:2x2x1
jax: 0.10.0
libtpu: 0.0.40
codegen_flags: <defaults>
</compile_context>

<pallas_src>
import functools

import jax
import jax.numpy as jnp
from jax.experimental import pallas as pl
from jax.experimental.pallas import tpu as pltpu


_LANE = 128          # lane width: padding target for HBM-facing last dims
_BF16_SUBLANE = 16   # bf16 sublane tile: padding target for internal widths
_MAX_TM = 256        # batch tile cap (fills MXU rows on v6e/v7x; fine on v5e)


def _round_up(x, m):
    return ((x + m - 1) // m) * m


# ---------------------------------------------------------------------------
# Fused kernel: straight-line (bf16 MXU matmul -> f32 bias + ReLU) per layer.
# Hidden activations live in vregs between layers — no scratch round-trip.
# ---------------------------------------------------------------------------
def _fused_mlp_kernel(n_layers, x_ref, *refs):
    """refs = (w_0, b_0, ..., w_{L-1}, b_{L-1}, o_ref)."""
    wb = refs[: 2 * n_layers]
    o_ref = refs[2 * n_layers]

    h = x_ref[...]                                           # f32 (TM, d_in_p)
    for i in range(n_layers):
        w = wb[2 * i][...]                                   # bf16 (K_i, N_i)
        b = wb[2 * i + 1][...]                               # f32  (1,  N_i)
        y = jnp.dot(h.astype(jnp.bfloat16), w,
                    preferred_element_type=jnp.float32)      # MXU, f32 accum
        h = jnp.maximum(y + b, 0.0)                          # VPU, f32 epilogue
    o_ref[...] = h.astype(o_ref.dtype)


# ---------------------------------------------------------------------------
# Parameter setup (mirrors the PyTorch module's __init__)
# ---------------------------------------------------------------------------
def init_encoder_params(key, sizes):
    """Layer i: weight (sizes[i+1], sizes[i]) [PyTorch layout], bias (sizes[i+1],).

    Layer 0 weight uses xavier_uniform_ bounds; the rest use PyTorch's default
    nn.Linear init bounds U(-1/sqrt(fan_in), 1/sqrt(fan_in))."""
    params = []
    for i in range(len(sizes) - 1):
        fan_in, fan_out = sizes[i], sizes[i + 1]
        key, kw, kb = jax.random.split(key, 3)
        if i == 0:
            limit = jnp.sqrt(6.0 / (fan_in + fan_out))   # xavier_uniform_
        else:
            limit = 1.0 / jnp.sqrt(fan_in)               # default Linear weight init
        w = jax.random.uniform(kw, (fan_out, fan_in), jnp.float32, -limit, limit)
        b_limit = 1.0 / jnp.sqrt(fan_in)                 # default Linear bias init
        b = jax.random.uniform(kb, (fan_out,), jnp.float32, -b_limit, b_limit)
        params.append((w, b))
    return params


def prepare_encoder_params(params):
    """One-time setup: transpose (out,in)->(in,out), zero-pad, cast weights to bf16.

    Padding targets: layer-0 input features and the FINAL output width are
    lane-padded to 128 (unmasked HBM loads / lane-dense vst); intermediate
    widths (never stored to HBM) only need the bf16 sublane tile (16).
    Zero padding is exact: padded rows/cols/bias are 0 and ReLU(0)=0."""
    n = len(params)
    prepared = []
    for i, (w, b) in enumerate(params):
        d_out, d_in = w.shape
        d_in_p = _round_up(d_in, _LANE if i == 0 else _BF16_SUBLANE)
        d_out_p = _round_up(d_out, _LANE if i == n - 1 else _BF16_SUBLANE)
        wt = (jnp.zeros((d_in_p, d_out_p), jnp.float32)
              .at[:d_in, :d_out].set(w.T)
              .astype(jnp.bfloat16))                       # bf16 MXU operand
        bp = jnp.zeros((1, d_out_p), jnp.float32).at[0, :d_out].set(b)
        prepared.append((wt, bp))
    return tuple(prepared)


# ---------------------------------------------------------------------------
# Forward pass: pad x, run the single fused Pallas kernel, slice padding off.
# ---------------------------------------------------------------------------
def _fused_encoder(x, prepared_params, out_features):
    batch, d_in = x.shape
    n_layers = len(prepared_params)
    d_in_p = prepared_params[0][0].shape[0]
    d_out_p = prepared_params[-1][0].shape[1]

    # Batch tile: >=16 (bf16 sublane), capped at _MAX_TM; pad batch so the
    # grid divides exactly.
    tm = min(_MAX_TM, _round_up(max(batch, 1), _BF16_SUBLANE))
    batch_p = _round_up(batch, tm)
    grid_m = batch_p // tm

    x_p = jnp.zeros((batch_p, d_in_p), jnp.float32).at[:batch, :d_in].set(
        x.astype(jnp.float32))

    flat_inputs = [x_p]
    in_specs = [pl.BlockSpec((tm, d_in_p), lambda i: (i, 0))]
    for w, b in prepared_params:
        flat_inputs.extend([w, b])
        # Constant block index -> weights/biases stay VMEM-resident across the
        # batch grid (the pipeline skips re-fetching unchanged blocks).
        in_specs.append(pl.BlockSpec(w.shape, lambda i: (0, 0)))
        in_specs.append(pl.BlockSpec(b.shape, lambda i: (0, 0)))
    out_specs = pl.BlockSpec((tm, d_out_p), lambda i: (i, 0))

    # Advisory cost estimate so XLA schedules around the fused call sensibly.
    flops = sum(2 * batch_p * w.shape[0] * w.shape[1] + 2 * batch_p * w.shape[1]
                for w, _ in prepared_params)
    param_bytes = sum(w.nbytes + b.nbytes for w, b in prepared_params)
    bytes_accessed = x_p.nbytes + param_bytes + batch_p * d_out_p * 4

    # VMEM budget: resident weights/biases + double-buffered activation tiles,
    # with headroom; clamped so it stays safe under v7x's 64 MiB physical VMEM.
    resident = (param_bytes
                + 2 * tm * d_in_p * 4      # double-buffered input tile (f32)
                + 2 * tm * d_out_p * 4)    # double-buffered output tile (f32)
    vmem_limit = int(min(max(2 * resident + (8 << 20), 32 << 20), 48 << 20))

    kernel = functools.partial(_fused_mlp_kernel, n_layers)
    out_p = pl.pallas_call(
        kernel,
        out_shape=jax.ShapeDtypeStruct((batch_p, d_out_p), x.dtype),
        grid=(grid_m,),
        in_specs=in_specs,
        out_specs=out_specs,
        compiler_params=pltpu.CompilerParams(
            dimension_semantics=("parallel",),   # v7x: shard batch over 2 TCs
            vmem_limit_bytes=vmem_limit),
        cost_estimate=pl.CostEstimate(flops=flops, transcendentals=0,
                                      bytes_accessed=bytes_accessed),
    )(*flat_inputs)

    return out_p[:batch, :out_features]


@functools.partial(jax.jit, static_argnames=("out_features",))
def encoder_forward(x, prepared_params, *, out_features):
    return _fused_encoder(x, prepared_params, out_features)


def encoder_forward_ref(x, params):
    """Pure-JAX f32 reference reproducing nn.Sequential(Linear, ReLU, ...)."""
    h = x
    for w, b in params:
        h = jnp.maximum(h @ w.T + b, 0.0)
    return h


if __name__ == "__main__":
    key = jax.random.PRNGKey(0)
    sizes = (32, 64, 16)          # Encoder(sizes): 2 Linear+ReLU layers
    batch = 8

    key, kx = jax.random.split(key)
    x = jax.random.normal(kx, (batch, sizes[0]), jnp.float32)

    params = init_encoder_params(key, sizes)      # PyTorch-layout (out, in) weights
    prepared = prepare_encoder_params(params)     # transposed + padded + bf16, once

    out = encoder_forward(x, prepared, out_features=sizes[-1])
    out = jax.block_until_ready(out)

    ref = encoder_forward_ref(x, params)
    assert out.shape == (batch, sizes[-1])
    # bf16 MXU operands with f32 accumulation deviate slightly from the pure
    # f32 PyTorch reference -> tolerance-test rather than bit-exact compare.
    assert jnp.allclose(out, ref, atol=5e-2, rtol=5e-2), (
        "mismatch vs reference, max abs err "
        f"{float(jnp.max(jnp.abs(out - ref))):.4g}")

    print("KERNEL_OK")
</pallas_src>

<mosaic_0001>
module attributes {stable_mosaic.version = 11 : i64} {
  func.func @_fused_mlp_kernel(%arg0: i32, %arg1: memref<16x128xf32, #tpu.memory_space<vmem>>, %arg2: memref<128x64xbf16, #tpu.memory_space<vmem>>, %arg3: memref<1x64xf32, #tpu.memory_space<vmem>>, %arg4: memref<64x128xbf16, #tpu.memory_space<vmem>>, %arg5: memref<1x128xf32, #tpu.memory_space<vmem>>, %arg6: memref<16x128xf32, #tpu.memory_space<vmem>>) attributes {dimension_semantics = [#tpu.dimension_semantics<parallel>], iteration_bounds = array<i64: 1>, scalar_prefetch = 0 : i64, scratch_operands = 0 : i64, tpu.core_type = #tpu.core_type<tc>, window_params = [{transform_indices = @transform_0, window_bounds = array<i64: 16, 128>}, {pipeline_mode = #tpu.pipeline_mode<synchronous>, transform_indices = @transform_1, window_bounds = array<i64: 128, 64>}, {pipeline_mode = #tpu.pipeline_mode<synchronous>, transform_indices = @transform_2, window_bounds = array<i64: 1, 64>}, {pipeline_mode = #tpu.pipeline_mode<synchronous>, transform_indices = @transform_3, window_bounds = array<i64: 64, 128>}, {pipeline_mode = #tpu.pipeline_mode<synchronous>, transform_indices = @transform_4, window_bounds = array<i64: 1, 128>}, {transform_indices = @transform_5, window_bounds = array<i64: 16, 128>}]} {
    %c0 = arith.constant 0 : index
    %c0_0 = arith.constant 0 : index
    %0 = vector.load %arg1[%c0, %c0_0] : memref<16x128xf32, #tpu.memory_space<vmem>>, vector<16x128xf32>
    %c0_1 = arith.constant 0 : index
    %c0_2 = arith.constant 0 : index
    %1 = vector.load %arg2[%c0_1, %c0_2] : memref<128x64xbf16, #tpu.memory_space<vmem>>, vector<128x64xbf16>
    %c0_3 = arith.constant 0 : index
    %c0_4 = arith.constant 0 : index
    %2 = vector.load %arg3[%c0_3, %c0_4] : memref<1x64xf32, #tpu.memory_space<vmem>>, vector<1x64xf32>
    %3 = arith.truncf %0 : vector<16x128xf32> to vector<16x128xbf16>
    %cst = arith.constant dense<0.000000e+00> : vector<16x64xf32>
    %4 = tpu.matmul %3, %1, %cst {dimension_numbers = #tpu.dot_dimension_numbers<[1], [0], [0], [1], [0, 0, 1, 1], [], []>} : vector<16x128xbf16>, vector<128x64xbf16>, vector<16x64xf32> -> vector<16x64xf32>
    %5 = vector.broadcast %2 : vector<1x64xf32> to vector<16x64xf32>
    %6 = arith.addf %4, %5 : vector<16x64xf32>
    %cst_5 = arith.constant 0.000000e+00 : f32
    %7 = vector.broadcast %cst_5 : f32 to vector<16x64xf32>
    %8 = arith.maximumf %6, %7 : vector<16x64xf32>
    %c0_6 = arith.constant 0 : index
    %c0_7 = arith.constant 0 : index
    %9 = vector.load %arg4[%c0_6, %c0_7] : memref<64x128xbf16, #tpu.memory_space<vmem>>, vector<64x128xbf16>
    %c0_8 = arith.constant 0 : index
    %c0_9 = arith.constant 0 : index
    %10 = vector.load %arg5[%c0_8, %c0_9] : memref<1x128xf32, #tpu.memory_space<vmem>>, vector<1x128xf32>
    %11 = arith.truncf %8 : vector<16x64xf32> to vector<16x64xbf16>
    %cst_10 = arith.constant dense<0.000000e+00> : vector<16x128xf32>
    %12 = tpu.matmul %11, %9, %cst_10 {dimension_numbers = #tpu.dot_dimension_numbers<[1], [0], [0], [1], [0, 0, 1, 1], [], []>} : vector<16x64xbf16>, vector<64x128xbf16>, vector<16x128xf32> -> vector<16x128xf32>
    %13 = vector.broadcast %10 : vector<1x128xf32> to vector<16x128xf32>
    %14 = arith.addf %12, %13 : vector<16x128xf32>
    %cst_11 = arith.constant 0.000000e+00 : f32
    %15 = vector.broadcast %cst_11 : f32 to vector<16x128xf32>
    %16 = arith.maximumf %14, %15 : vector<16x128xf32>
    %c0_12 = arith.constant 0 : index
    %c0_13 = arith.constant 0 : index
    %17 = vector.load %arg6[%c0_12, %c0_13] : memref<16x128xf32, #tpu.memory_space<vmem>>, vector<16x128xf32>
    tpu.vector_store %arg6[%c0_12, %c0_13], %16 {strides = array<i32>} : memref<16x128xf32, #tpu.memory_space<vmem>>, vector<16x128xf32>,
    return
  }
  func.func @transform_0(%arg0: i32) -> (i32, i32) {
    %c0_i32 = arith.constant 0 : i32
    %c0_i32_0 = arith.constant 0 : i32
    return %arg0, %c0_i32 : i32, i32
  }
  func.func @transform_1(%arg0: i32) -> (i32, i32) {
    %c0_i32 = arith.constant 0 : i32
    %c0_i32_0 = arith.constant 0 : i32
    %c0_i32_1 = arith.constant 0 : i32
    return %c0_i32, %c0_i32_0 : i32, i32
  }
  func.func @transform_2(%arg0: i32) -> (i32, i32) {
    %c0_i32 = arith.constant 0 : i32
    %c0_i32_0 = arith.constant 0 : i32
    %c0_i32_1 = arith.constant 0 : i32
    return %c0_i32, %c0_i32_0 : i32, i32
  }
  func.func @transform_3(%arg0: i32) -> (i32, i32) {
    %c0_i32 = arith.constant 0 : i32
    %c0_i32_0 = arith.constant 0 : i32
    %c0_i32_1 = arith.constant 0 : i32
    return %c0_i32, %c0_i32_0 : i32, i32
  }
  func.func @transform_4(%arg0: i32) -> (i32, i32) {
    %c0_i32 = arith.constant 0 : i32
    %c0_i32_0 = arith.constant 0 : i32
    %c0_i32_1 = arith.constant 0 : i32
    return %c0_i32, %c0_i32_0 : i32, i32
  }
  func.func @transform_5(%arg0: i32) -> (i32, i32) {
    %c0_i32 = arith.constant 0 : i32
    %c0_i32_0 = arith.constant 0 : i32
    return %arg0, %c0_i32 : i32, i32
  }
}

</mosaic_0001>

<llo_original>
// kernel: encoder_forward.1
$region0: #{encoder_forward.1}
  #allocation0 [shape = 'u32[]', space=smem, size = 0x4, offset = 0x4, fixed_abs, tag = 'smem constant byte address 0x4 - core index']
  #allocation1 [shape = 'u32[144,128]{1,0:T(1,128)}', space=vmem, size = 0x12000, scoped, tag = 'internal scratch']
  %s0 = inlined_call_operand.vmem [shape: f32[16,128], index: 0, kind: input, shape index: {}]
  %s1 = inlined_call_operand.vmem [shape: bf16[128,64], index: 1, kind: input, shape index: {}]
  %s2 = inlined_call_operand.vmem [shape: f32[1,64], index: 2, kind: input, shape index: {}]
  %s3 = inlined_call_operand.vmem [shape: bf16[64,128], index: 3, kind: input, shape index: {}]
  %s4 = inlined_call_operand.vmem [shape: f32[1,128], index: 4, kind: input, shape index: {}]
  %s5 = inlined_call_operand.vmem [shape: f32[16,128], index: 5, kind: output, shape index: {}]
  %s6 = sld [smem:[#allocation0]]
  $region30: #{encoder_forward.1} parent=0
    _
  %s8 = ssub.s32 1, %s6
  %s9 = scalar_select 0, %s8, %s6
  // Predicated region
  $region2: #{encoder_forward.1} parent=0 // pred_check
    _
  $region3: #{encoder_forward.1} parent=0 // pred_check_branch
    %11 = sbr.rel (0) target = $region5
  $region4: #{encoder_forward.1} parent=0 // pred_region
    _
  $region5: #{encoder_forward.1} parent=0 // pred_fallthru
    _
  // Predicated region
  $region6: #{encoder_forward.1} parent=0 // pred_check
    _
  $region7: #{encoder_forward.1} parent=0 // pred_check_branch
    %13 = sbr.rel (0) target = $region9
  $region8: #{encoder_forward.1} parent=0 // pred_region
    _
  $region9: #{encoder_forward.1} parent=0 // pred_fallthru
    _
  // Predicated region
  $region10: #{encoder_forward.1} parent=0 // pred_check
    _
  $region11: #{encoder_forward.1} parent=0 // pred_check_branch
    %15 = sbr.rel (0) target = $region13
  $region12: #{encoder_forward.1} parent=0 // pred_region
    _
  $region13: #{encoder_forward.1} parent=0 // pred_fallthru
    _
  // Predicated region
  $region14: #{encoder_forward.1} parent=0 // pred_check
    _
  $region15: #{encoder_forward.1} parent=0 // pred_check_branch
    %17 = sbr.rel (0) target = $region17
  $region16: #{encoder_forward.1} parent=0 // pred_region
    _
  $region17: #{encoder_forward.1} parent=0 // pred_fallthru
    _
  // Predicated region
  $region18: #{encoder_forward.1} parent=0 // pred_check
    _
  $region19: #{encoder_forward.1} parent=0 // pred_check_branch
    %19 = sbr.rel (0) target = $region21
  $region20: #{encoder_forward.1} parent=0 // pred_region
    _
  $region21: #{encoder_forward.1} parent=0 // pred_fallthru
    _
  %v21 = vld [vmem:[%s0] sm:$0xff]
  %v22 = vld [vmem:[%s0 + $0x8] sm:$0xff]
  %v23 = vld [vmem:[%s1] sm:$0xf]
  %v24 = vld [vmem:[%s1 + $0x4] sm:$0xf]
  %v25 = vld [vmem:[%s1 + $0x8] sm:$0xf]
  %v26 = vld [vmem:[%s1 + $0xc] sm:$0xf]
  %v27 = vld [vmem:[%s1 + $0x10] sm:$0xf]
  %v28 = vld [vmem:[%s1 + $0x14] sm:$0xf]
  %v29 = vld [vmem:[%s1 + $0x18] sm:$0xf]
  %v30 = vld [vmem:[%s1 + $0x1c] sm:$0xf]
  %v31 = vld [vmem:[%s1 + $0x20] sm:$0xf]
  %v32 = vld [vmem:[%s1 + $0x24] sm:$0xf]
  %v33 = vld [vmem:[%s1 + $0x28] sm:$0xf]
  %v34 = vld [vmem:[%s1 + $0x2c] sm:$0xf]
  %v35 = vld [vmem:[%s1 + $0x30] sm:$0xf]
  %v36 = vld [vmem:[%s1 + $0x34] sm:$0xf]
  %v37 = vld [vmem:[%s1 + $0x38] sm:$0xf]
  %v38 = vld [vmem:[%s1 + $0x3c] sm:$0xf]
  %v39 = vld [vmem:[%s2] sm:$0x1]
  %v40 = vpack.c.bf16 %v22, %v21
  %v42 = vlaneseq
  %v43 = vshrl.u32 %v42, 7
  %v44 = vsub.s32 0, %v43
  %v45 = vrot.slane %v39, %v44
  %v63 = vunpack.c.l.b16 %v23
  %v64 = vunpack.c.l.b16 %v24
  %v65 = vunpack.c.l.b16 %v25
  %v66 = vunpack.c.l.b16 %v26
  %v67 = vunpack.c.l.b16 %v27
  %v68 = vunpack.c.l.b16 %v28
  %v69 = vunpack.c.l.b16 %v29
  %v70 = vunpack.c.l.b16 %v30
  %v71 = vunpack.c.l.b16 %v31
  %v72 = vunpack.c.l.b16 %v32
  %v73 = vunpack.c.l.b16 %v33
  %v74 = vunpack.c.l.b16 %v34
  %v75 = vunpack.c.l.b16 %v35
  %v76 = vunpack.c.l.b16 %v36
  %v77 = vunpack.c.l.b16 %v37
  %v78 = vunpack.c.l.b16 %v38
  %v79 = vpack.c.b16 %v64, %v63
  %v80 = vpack.c.b16 %v66, %v65
  %v81 = vpack.c.b16 %v68, %v67
  %v82 = vpack.c.b16 %v70, %v69
  %v83 = vpack.c.b16 %v72, %v71
  %v84 = vpack.c.b16 %v74, %v73
  %v85 = vpack.c.b16 %v76, %v75
  %v86 = vpack.c.b16 %v78, %v77
  %95 = vmatprep.subr.bf16.mxu0 0
  %96 = vmatpush1.bf16.msra.mxu0 %v79
  %97 = vmatprep.subr.bf16.mxu0 0
  %98 = vmatpush1.bf16.msra.mxu0 %v80
  %99 = vmatprep.subr.bf16.mxu0 0
  %100 = vmatpush1.bf16.msra.mxu0 %v81
  %101 = vmatprep.subr.bf16.mxu0 0
  %102 = vmatpush1.bf16.msra.mxu0 %v82
  %103 = vmatprep.subr.bf16.mxu0 0
  %104 = vmatpush1.bf16.msra.mxu0 %v83
  %105 = vmatprep.subr.bf16.mxu0 0
  %106 = vmatpush1.bf16.msra.mxu0 %v84
  %107 = vmatprep.subr.bf16.mxu0 0
  %108 = vmatpush1.bf16.msra.mxu0 %v85
  %109 = vmatprep.subr.bf16.mxu0 0
  %110 = vmatpush1.bf16.msra.mxu0 %v86
  %111 = vmatprep.subr.bf16.mxu0 0
  %112 = vmatpush1.bf16.msra.mxu0 0
  %113 = vmatprep.subr.bf16.mxu0 0
  %114 = vmatpush1.bf16.msra.mxu0 0
  %115 = vmatprep.subr.bf16.mxu0 0
  %116 = vmatpush1.bf16.msra.mxu0 0
  %117 = vmatprep.subr.bf16.mxu0 0
  %118 = vmatpush1.bf16.msra.mxu0 0
  %119 = vmatprep.subr.bf16.mxu0 0
  %120 = vmatpush1.bf16.msra.mxu0 0
  %121 = vmatprep.subr.bf16.mxu0 0
  %122 = vmatpush1.bf16.msra.mxu0 0
  %123 = vmatprep.subr.bf16.mxu0 0
  %124 = vmatpush1.bf16.msra.mxu0 0
  %125 = vmatprep.subr.bf16.mxu0 0
  %126 = vmatpush1.bf16.msra.mxu0 0
  %127 = vmatprep.mubr.bf16.mxu0 0
  %128 = vmatmul.mubr.bf16.gmra.mrb[0].mxu0 %v40
  %v129 = vpop.f32.mrb[0].mxu0
  %v130 = vadd.f32 %v45, %v129
  %v131 = vpop.f32.mrb[0].mxu0
  %v132 = vpop.f32.mrb[0].mxu0
  %v133 = vadd.f32 %v45, %v132
  %v134 = vpop.f32.mrb[0].mxu0
  %135 = vdwg.mxu0
  %v136 = vmax.f32 %v130, 0.0
  %v137 = vmax.f32 %v133, 0.0
  %v138 = vld [vmem:[%s3] sm:$0xf]
  %v139 = vld [vmem:[%s3 + $0x4] sm:$0xf]
  %v140 = vld [vmem:[%s3 + $0x8] sm:$0xf]
  %v141 = vld [vmem:[%s3 + $0xc] sm:$0xf]
  %v142 = vld [vmem:[%s3 + $0x10] sm:$0xf]
  %v143 = vld [vmem:[%s3 + $0x14] sm:$0xf]
  %v144 = vld [vmem:[%s3 + $0x18] sm:$0xf]
  %v145 = vld [vmem:[%s3 + $0x1c] sm:$0xf]
  %v146 = vld [vmem:[%s4] sm:$0x1]
  %v147 = vpack.c.bf16 %v137, %v136
  %v149 = vlaneseq
  %v150 = vshrl.u32 %v149, 7
  %v151 = vsub.s32 0, %v150
  %v152 = vrot.slane %v146, %v151
  %v162 = vunpack.c.l.b16 %v138
  %v163 = vunpack.c.l.b16 %v139
  %v164 = vunpack.c.l.b16 %v140
  %v165 = vunpack.c.l.b16 %v141
  %v166 = vunpack.c.l.b16 %v142
  %v167 = vunpack.c.l.b16 %v143
  %v168 = vunpack.c.l.b16 %v144
  %v169 = vunpack.c.l.b16 %v145
  %v170 = vpack.c.b16 %v163, %v162
  %v171 = vpack.c.b16 %v165, %v164
  %v172 = vpack.c.b16 %v167, %v166
  %v173 = vpack.c.b16 %v169, %v168
  %vm178 = vcmask 523264
  %v180 = vsel %vm178, %v147, 0
  %182 = vmatprep.subr.bf16.mxu0 0
  %183 = vmatpush1.bf16.msra.mxu0 %v170
  %184 = vmatprep.subr.bf16.mxu0 0
  %185 = vmatpush1.bf16.msra.mxu0 %v171
  %186 = vmatprep.subr.bf16.mxu0 0
  %187 = vmatpush1.bf16.msra.mxu0 %v172
  %188 = vmatprep.subr.bf16.mxu0 0
  %189 = vmatpush1.bf16.msra.mxu0 %v173
  %190 = vmatprep.subr.bf16.mxu0 0
  %191 = vmatpush1.bf16.msra.mxu0 0
  %192 = vmatprep.subr.bf16.mxu0 0
  %193 = vmatpush1.bf16.msra.mxu0 0
  %194 = vmatprep.subr.bf16.mxu0 0
  %195 = vmatpush1.bf16.msra.mxu0 0
  %196 = vmatprep.subr.bf16.mxu0 0
  %197 = vmatpush1.bf16.msra.mxu0 0
  %198 = vmatprep.subr.bf16.mxu0 0
  %199 = vmatpush1.bf16.msra.mxu0 0
  %200 = vmatprep.subr.bf16.mxu0 0
  %201 = vmatpush1.bf16.msra.mxu0 0
  %202 = vmatprep.subr.bf16.mxu0 0
  %203 = vmatpush1.bf16.msra.mxu0 0
  %204 = vmatprep.subr.bf16.mxu0 0
  %205 = vmatpush1.bf16.msra.mxu0 0
  %206 = vmatprep.subr.bf16.mxu0 0
  %207 = vmatpush1.bf16.msra.mxu0 0
  %208 = vmatprep.subr.bf16.mxu0 0
  %209 = vmatpush1.bf16.msra.mxu0 0
  %210 = vmatprep.subr.bf16.mxu0 0
  %211 = vmatpush1.bf16.msra.mxu0 0
  %212 = vmatprep.subr.bf16.mxu0 0
  %213 = vmatpush1.bf16.msra.mxu0 0
  %214 = vmatprep.mubr.bf16.mxu0 0
  %215 = vmatmul.mubr.bf16.gmra.mrb[0].mxu0 %v180
  %v216 = vpop.f32.mrb[0].mxu0
  %v217 = vadd.f32 %v152, %v216
  %v218 = vpop.f32.mrb[0].mxu0
  %v219 = vpop.f32.mrb[0].mxu0
  %v220 = vadd.f32 %v152, %v219
  %v221 = vpop.f32.mrb[0].mxu0
  %222 = vdwg.mxu0
  %v223 = vmax.f32 %v217, 0.0
  %v224 = vmax.f32 %v220, 0.0
  %225 = vst [vmem:[%s5] sm:$0xff] %v223
  %226 = vst [vmem:[%s5 + $0x8] sm:$0xff] %v224
  // Predicated region
  $region22: #{encoder_forward.1} parent=0 // pred_check
    _
  $region23: #{encoder_forward.1} parent=0 // pred_check_branch
    %228 = sbr.rel (0) target = $region25
  $region24: #{encoder_forward.1} parent=0 // pred_region
    _
  $region25: #{encoder_forward.1} parent=0 // pred_fallthru
    _
  // Predicated region
  $region26: #{encoder_forward.1} parent=0 // pred_check
    _
  $region27: #{encoder_forward.1} parent=0 // pred_check_branch
    %230 = sbr.rel (0) target = $region29
  $region28: #{encoder_forward.1} parent=0 // pred_region
    _
  $region29: #{encoder_forward.1} parent=0 // pred_fallthru
    _

</llo_original>
